<compile_context>
chip_gen: v6e
topology: v6e:2x2x1
jax: 0.10.0
libtpu: 0.0.40
codegen_flags: <defaults>
</compile_context>

<pallas_src>
import functools
import math

import jax
import jax.numpy as jnp
from jax import lax
from jax.experimental import pallas as pl
from jax.experimental.pallas import tpu as pltpu

LN_EPS_PROJ = 1e-5     # nn.LayerNorm default
LN_EPS_BERT = 1e-12    # BertConfig.layer_norm_eps default
BN_EPS = 1e-5          # nn.BatchNorm1d default
BF16 = jnp.bfloat16
F32 = jnp.float32

_VMEM_LIMIT = None


def _vmem_limit_bytes():
    """~3/4 of physical VMEM (96 MiB on v5e/v6e, 48 MiB on v7x)."""
    global _VMEM_LIMIT
    if _VMEM_LIMIT is None:
        try:
            _VMEM_LIMIT = int(pltpu.get_tpu_info().vmem_capacity_bytes * 3 // 4)
        except Exception:
            _VMEM_LIMIT = 48 * 1024 * 1024
    return _VMEM_LIMIT


# ------------------------------------------------------------ shared math ---
def _ln(y, g, b, eps):
    mu = jnp.mean(y, axis=-1, keepdims=True)
    var = jnp.mean(jnp.square(y - mu), axis=-1, keepdims=True)
    return (y - mu) * lax.rsqrt(var + eps) * g + b


def _gelu_exact(x):
    return 0.5 * x * (1.0 + lax.erf(x * (1.0 / math.sqrt(2.0))))


def _dot(x, w, b=None):
    # bf16 operands on the MXU, f32 accumulation.
    y = jnp.dot(x.astype(BF16), w, preferred_element_type=F32)
    return y if b is None else y + b


# ------------------------------------------------------------------ kernels -
def _frontend_kernel(xc_ref, xn_ref, bn_ref, wc_ref, wn_ref, wm1_ref, wm2_ref,
                     pos_ref, vec_ref, o_ref, *, tb):
    """cate_proj + cont_bn/cont_embed + comb_proj + BertEmbeddings, TB rows."""
    TB, S, nCE = xc_ref.shape
    n_cont = xn_ref.shape[-1]
    vec = vec_ref[...]                 # (12, H) bias / LN / token-type slab
    bn = bn_ref[...]                   # (2, n_cont) folded BatchNorm scale/shift

    def row(m, i):                     # keep rows 2-D (1, H)
        return m[i:i + 1]

    xc = xc_ref[...].reshape(TB * S, nCE)
    xn = xn_ref[...].reshape(TB * S, n_cont)

    yc = _ln(_dot(xc, wc_ref[...], row(vec, 0)), row(vec, 1), row(vec, 2),
             LN_EPS_PROJ)                                         # cate_proj
    yn = _ln(_dot(xn * row(bn, 0) + row(bn, 1), wn_ref[...], row(vec, 3)),
             row(vec, 4), row(vec, 5), LN_EPS_PROJ)               # BN + cont_embed
    # comb_proj: ReLU(concat([yc, yn])) @ W == ReLU(yc)@W[:H] + ReLU(yn)@W[H:]
    ym = (_dot(jnp.maximum(yc, 0.0), wm1_ref[...])
          + _dot(jnp.maximum(yn, 0.0), wm2_ref[...]) + row(vec, 6))
    ym = _ln(ym, row(vec, 7), row(vec, 8), LN_EPS_PROJ)
    H = ym.shape[-1]
    emb = ym.reshape(TB, S, H) + pos_ref[...] + row(vec, 9)       # +pos +tok[0]
    o_ref[...] = _ln(emb, row(vec, 10), row(vec, 11), LN_EPS_BERT)


def _encoder_kernel(x_ref, bias_ref, wqkv_r, bqkv_r, wo_r, wi_r, bi_r, wo2_r,
                    vec_r, fcw_r, fcb_r, o_ref, h_scr, *, n_heads, tb):
    """All BertLayers fused: grid=(batch_blocks, n_layers), layer innermost.

    The (TB, S, H) activation lives in VMEM scratch across the layer axis; the
    fc head is applied on the last layer and written as a lane-dense (TB,1,S)
    block.
    """
    l = pl.program_id(1)
    n_l = pl.num_programs(1)

    @pl.when(l == 0)
    def _():
        h_scr[...] = x_ref[...]        # load the frontend output once per block

    TB, S, H = h_scr.shape
    dh = H // n_heads

    def row(m, i):
        return m[i:i + 1]

    wqkv = wqkv_r[0]                   # (H, 3H) bf16
    bqkv = bqkv_r[0]                   # (1, 3H) f32
    wo = wo_r[0]
    wi = wi_r[0]
    bi = bi_r[0]
    wo2 = wo2_r[0]
    vec = vec_r[0]                     # (8, H): bo, g1, b1, bo2, g2, b2, pad, pad

    x2 = h_scr[...].reshape(TB * S, H)                 # f32 carry

    qkv = _dot(x2, wqkv, bqkv)                         # fused Q/K/V projection
    q = qkv[:, :H].reshape(TB, S, H)
    k = qkv[:, H:2 * H].reshape(TB, S, H)
    v = qkv[:, 2 * H:].reshape(TB, S, H)

    scale = 1.0 / math.sqrt(dh)
    ctx_rows = []
    for r in range(tb):                # static unroll over batch rows in block
        qh = jnp.swapaxes(q[r].reshape(S, n_heads, dh), 0, 1).astype(BF16)
        kh = jnp.swapaxes(k[r].reshape(S, n_heads, dh), 0, 1).astype(BF16)
        vh = jnp.swapaxes(v[r].reshape(S, n_heads, dh), 0, 1).astype(BF16)
        s = jnp.einsum('hqd,hkd->hqk', qh, kh, preferred_element_type=F32)
        s = s * scale + bias_ref[r]                    # additive attention mask
        s = s - jnp.max(s, axis=-1, keepdims=True)
        p = jnp.exp(s)
        p = p * pl.reciprocal(jnp.sum(p, axis=-1, keepdims=True), approx=True)
        c = jnp.einsum('hqk,hkd->hqd', p.astype(BF16), vh,
                       preferred_element_type=F32)
        ctx_rows.append(jnp.swapaxes(c, 0, 1).reshape(S, H))
    ctx = ctx_rows[0] if tb == 1 else jnp.concatenate(ctx_rows, axis=0)

    h1 = _ln(x2 + _dot(ctx, wo, row(vec, 0)), row(vec, 1), row(vec, 2),
             LN_EPS_BERT)
    ffn = _dot(_gelu_exact(_dot(h1, wi, bi)), wo2, row(vec, 3))
    h2 = _ln(h1 + ffn, row(vec, 4), row(vec, 5), LN_EPS_BERT)
    h_scr[...] = h2.reshape(TB, S, H)                  # carry to next layer

    @pl.when(l == n_l - 1)
    def _():
        logits = jnp.sum(h2 * fcw_r[...], axis=-1).reshape(TB, 1, S) + fcb_r[...]
        o_ref[...] = logits                            # lane-dense (TB, 1, S)


# ----------------------------------------------------------------- wrappers -
def _resident_spec(a):
    """Constant-index weight: single pipeline buffer (no useless 2x VMEM)."""
    nd = a.ndim
    return pl.BlockSpec(a.shape, lambda *_: (0,) * nd,
                        pipeline_mode=pl.Buffered(1))


def _pick_tb(B, S, m_cap=512):
    """Batch rows per block: fill the MXU M-dim but keep >=2 blocks when B>1."""
    best = 1
    for d in range(1, B + 1):
        if B % d == 0 and B // d >= 2 and d * S <= m_cap:
            best = max(best, d)
    return best


def frontend(xc, xn, params, S, tb):
    B, _, nCE = xc.shape
    n_cont = xn.shape[-1]
    H = params['comb_w1'].shape[1]
    pos = params['pos_emb'][:S]
    nb = B // tb
    act = lambda b: (b, 0, 0)
    args = (xc, xn, params['bn'], params['cate_proj_w'], params['cont_w'],
            params['comb_w1'], params['comb_w2'], pos, params['front_vec'])
    in_specs = ([pl.BlockSpec((tb, S, nCE), act),
                 pl.BlockSpec((tb, S, n_cont), act)]
                + [_resident_spec(a) for a in args[2:]])
    return pl.pallas_call(
        functools.partial(_frontend_kernel, tb=tb),
        grid=(nb,),
        out_shape=jax.ShapeDtypeStruct((B, S, H), F32),
        in_specs=in_specs,
        out_specs=pl.BlockSpec((tb, S, H), act),
        compiler_params=pltpu.CompilerParams(
            dimension_semantics=("parallel",),
            vmem_limit_bytes=_vmem_limit_bytes()),
    )(*args)


def encoder(x, bias3, enc, fc_w, fc_b, *, n_heads, tb):
    B, S, H = x.shape
    L = enc['wqkv'].shape[0]
    inter = enc['wi'].shape[-1]
    nb = B // tb

    act = lambda b, l: (b, 0, 0)        # constant over the layer axis
    wmap = lambda b, l: (l, 0, 0)       # per-layer streamed weights

    in_specs = [
        pl.BlockSpec((tb, S, H), act),
        pl.BlockSpec((tb, 1, S), act),
        pl.BlockSpec((1, H, 3 * H), wmap),
        pl.BlockSpec((1, 1, 3 * H), wmap),
        pl.BlockSpec((1, H, H), wmap),
        pl.BlockSpec((1, H, inter), wmap),
        pl.BlockSpec((1, 1, inter), wmap),
        pl.BlockSpec((1, inter, H), wmap),
        pl.BlockSpec((1, 8, H), wmap),
        _resident_spec(fc_w),
        _resident_spec(fc_b),
    ]
    return pl.pallas_call(
        functools.partial(_encoder_kernel, n_heads=n_heads, tb=tb),
        grid=(nb, L),
        out_shape=jax.ShapeDtypeStruct((B, 1, S), F32),
        in_specs=in_specs,
        out_specs=pl.BlockSpec((tb, 1, S), act),
        scratch_shapes=[pltpu.VMEM((tb, S, H), F32)],
        compiler_params=pltpu.CompilerParams(
            dimension_semantics=("parallel", "arbitrary"),
            vmem_limit_bytes=_vmem_limit_bytes()),
    )(x, bias3, enc['wqkv'], enc['bqkv'], enc['wo'], enc['wi'], enc['bi'],
      enc['wo2'], enc['vec'], fc_w, fc_b)


# --------------------------------------------------------- parameter init ----
def init_params(key, *, offset, E, H, n_cate, n_cont, n_layers, max_seq_len,
                inter):
    keys = iter(jax.random.split(key, 64))

    def nrm(shape, scale=0.02):
        return (scale * jax.random.normal(next(keys), shape)).astype(F32)

    def wgt(shape):                      # MXU weight matrices stored in bf16
        return nrm(shape).astype(BF16)

    p = {}
    emb = nrm((offset, E))
    p['cate_embed'] = emb.at[0].set(0.0)            # padding_idx=0 -> zero row
    p['cate_proj_w'] = wgt((E * n_cate, H))
    p['cont_w'] = wgt((n_cont, H))
    p['comb_w1'] = wgt((H, H))                      # split of the (2H, H) weight
    p['comb_w2'] = wgt((H, H))
    p['pos_emb'] = nrm((max_seq_len, H))

    # Front-end slab (12, H):
    #  0 cate_proj_b 1 cate_ln_g 2 cate_ln_b 3 cont_b 4 cont_ln_g 5 cont_ln_b
    #  6 comb_b      7 comb_ln_g 8 comb_ln_b 9 tok_emb0 10 emb_ln_g 11 emb_ln_b
    fv = nrm((12, H))
    fv = fv.at[jnp.array([1, 4, 7, 10])].add(1.0)   # LN gammas ~ 1
    p['front_vec'] = fv

    # BatchNorm1d eval-mode affine with default stats (rm=0, rv=1, g=1, b=0),
    # folded into a scale/shift pair.
    # TODO(synk): recompute from real running stats when loading a checkpoint.
    p['bn'] = jnp.stack([jnp.ones((n_cont,), F32) / jnp.sqrt(1.0 + BN_EPS),
                         jnp.zeros((n_cont,), F32)])

    L = n_layers
    enc = {
        'wqkv': wgt((L, H, 3 * H)),         # fused Wq|Wk|Wv
        'bqkv': nrm((L, 1, 3 * H)),
        'wo':   wgt((L, H, H)),
        'wi':   wgt((L, H, inter)),
        'bi':   nrm((L, 1, inter)),
        'wo2':  wgt((L, inter, H)),
    }
    # per-layer vector slab (8, H): 0 bo, 1 ln1_g, 2 ln1_b, 3 bo2, 4 ln2_g,
    # 5 ln2_b, 6-7 padding.
    ev = nrm((L, 8, H))
    ev = ev.at[:, jnp.array([1, 4])].add(1.0)       # LN gammas ~ 1
    ev = ev.at[:, 6:].set(0.0)
    enc['vec'] = ev
    p['enc'] = enc

    p['fc_w'] = nrm((1, H))                         # fc weight as a lane row
    p['fc_b'] = nrm((1, 1))
    return p


# ----------------------------------------------------- Pallas forward pass ---
def bert_forward(params, cate_x, cont_x, mask, *, n_heads):
    B, S, n_cate = cate_x.shape
    E = params['cate_embed'].shape[1]

    # embedding gather stays as JAX glue (scatter/gather DMA not worth it here)
    xc = jnp.take(params['cate_embed'], cate_x, axis=0).reshape(B, S, n_cate * E)
    xn = cont_x.astype(F32)
    bias3 = ((1.0 - mask.astype(F32)) * -10000.0).reshape(B, 1, S)

    tb = _pick_tb(B, S)
    h = frontend(xc, xn, params, S, tb)                        # (B, S, H)
    out = encoder(h, bias3, params['enc'], params['fc_w'], params['fc_b'],
                  n_heads=n_heads, tb=tb)                      # (B, 1, S)
    # NOTE: the module defines Sigmoid but never applies it in forward().
    return out[:, 0, :]                                        # (B, S)


# ------------------------------------------------- pure-JAX reference (check)-
def _ref_layer(h, bias, enc, l, n_heads):
    S, H = h.shape
    dh = H // n_heads
    vec = enc['vec'][l]
    qkv = _dot(h, enc['wqkv'][l], enc['bqkv'][l])
    q, k, v = qkv[:, :H], qkv[:, H:2 * H], qkv[:, 2 * H:]
    qh = jnp.swapaxes(q.reshape(S, n_heads, dh), 0, 1).astype(BF16)
    kh = jnp.swapaxes(k.reshape(S, n_heads, dh), 0, 1).astype(BF16)
    vh = jnp.swapaxes(v.reshape(S, n_heads, dh), 0, 1).astype(BF16)
    s = jnp.einsum('hqd,hkd->hqk', qh, kh, preferred_element_type=F32)
    s = s * (1.0 / math.sqrt(dh)) + bias
    s = s - jnp.max(s, axis=-1, keepdims=True)
    p = jnp.exp(s)
    p = p / jnp.sum(p, axis=-1, keepdims=True)
    ctx = jnp.einsum('hqk,hkd->hqd', p.astype(BF16), vh,
                     preferred_element_type=F32)
    ctx = jnp.swapaxes(ctx, 0, 1).reshape(S, H)
    h1 = _ln(h + _dot(ctx, enc['wo'][l], vec[0:1]), vec[1:2], vec[2:3],
             LN_EPS_BERT)
    ffn = _dot(_gelu_exact(_dot(h1, enc['wi'][l], enc['bi'][l])),
               enc['wo2'][l], vec[3:4])
    return _ln(h1 + ffn, vec[4:5], vec[5:6], LN_EPS_BERT)


def ref_forward(params, cate_x, cont_x, mask, *, n_heads):
    B, S, n_cate = cate_x.shape
    E = params['cate_embed'].shape[1]
    xc = jnp.take(params['cate_embed'], cate_x, axis=0).reshape(B, S, n_cate * E)
    bias3 = ((1.0 - mask.astype(F32)) * -10000.0).reshape(B, 1, S)
    fv = params['front_vec']
    bn = params['bn']
    pos = params['pos_emb'][:S]
    enc = params['enc']
    L = enc['wqkv'].shape[0]
    outs = []
    for b in range(B):
        yc = _ln(_dot(xc[b], params['cate_proj_w'], fv[0:1]), fv[1:2], fv[2:3],
                 LN_EPS_PROJ)
        yn = _ln(_dot(cont_x[b].astype(F32) * bn[0:1] + bn[1:2],
                      params['cont_w'], fv[3:4]), fv[4:5], fv[5:6], LN_EPS_PROJ)
        ym = (_dot(jnp.maximum(yc, 0.0), params['comb_w1'])
              + _dot(jnp.maximum(yn, 0.0), params['comb_w2']) + fv[6:7])
        ym = _ln(ym, fv[7:8], fv[8:9], LN_EPS_PROJ)
        h = _ln(ym + pos + fv[9:10], fv[10:11], fv[11:12], LN_EPS_BERT)
        for l in range(L):
            h = _ref_layer(h, bias3[b], enc, l, n_heads)
        outs.append(jnp.sum(h * params['fc_w'], axis=-1) + params['fc_b'][0, 0])
    return jnp.stack(outs)                          # (B, S)


# --------------------------------------------------------------------- main --
if __name__ == "__main__":
    B, S = 2, 8
    n_cate, n_cont = 3, 4
    E, H = 8, 32
    n_layers, n_heads = 2, 2
    offset = 20
    inter = 4 * H   # HF BertConfig default is 3072; 4*H for the small test.

    key = jax.random.PRNGKey(0)
    k_par, k_cate, k_cont = jax.random.split(key, 3)
    params = init_params(k_par, offset=offset, E=E, H=H, n_cate=n_cate,
                         n_cont=n_cont, n_layers=n_layers,
                         max_seq_len=S, inter=inter)

    mask = jnp.array([[1, 1, 1, 1, 1, 1, 1, 1],
                      [1, 1, 1, 1, 1, 0, 0, 0]], dtype=jnp.float32)
    cate_x = jax.random.randint(k_cate, (B, S, n_cate), 1, offset, dtype=jnp.int32)
    cate_x = cate_x * mask.astype(jnp.int32)[:, :, None]   # padded positions -> id 0
    cont_x = jax.random.normal(k_cont, (B, S, n_cont), dtype=jnp.float32)

    out = jax.block_until_ready(
        bert_forward(params, cate_x, cont_x, mask, n_heads=n_heads))
    ref = jax.block_until_ready(
        ref_forward(params, cate_x, cont_x, mask, n_heads=n_heads))

    assert out.shape == (B, S), out.shape
    assert jnp.all(jnp.isfinite(out))
    assert jnp.allclose(out, ref, atol=1e-2, rtol=1e-2), (out, ref)
    print("KERNEL_OK")
</pallas_src>

<mosaic_0001>
module attributes {stable_mosaic.version = 11 : i64} {
  func.func @_frontend_kernel(%arg0: i32, %arg1: memref<1x8x24xf32, #tpu.memory_space<vmem>>, %arg2: memref<1x8x4xf32, #tpu.memory_space<vmem>>, %arg3: memref<2x4xf32, #tpu.memory_space<vmem>>, %arg4: memref<24x32xbf16, #tpu.memory_space<vmem>>, %arg5: memref<4x32xbf16, #tpu.memory_space<vmem>>, %arg6: memref<32x32xbf16, #tpu.memory_space<vmem>>, %arg7: memref<32x32xbf16, #tpu.memory_space<vmem>>, %arg8: memref<8x32xf32, #tpu.memory_space<vmem>>, %arg9: memref<12x32xf32, #tpu.memory_space<vmem>>, %arg10: memref<1x8x32xf32, #tpu.memory_space<vmem>>) attributes {dimension_semantics = [#tpu.dimension_semantics<parallel>], iteration_bounds = array<i64: 2>, scalar_prefetch = 0 : i64, scratch_operands = 0 : i64, tpu.core_type = #tpu.core_type<tc>, window_params = [{transform_indices = @transform_0, window_bounds = array<i64: 1, 8, 24>}, {transform_indices = @transform_1, window_bounds = array<i64: 1, 8, 4>}, {pipeline_mode = #tpu.pipeline_mode<synchronous>, transform_indices = @transform_2, window_bounds = array<i64: 2, 4>}, {pipeline_mode = #tpu.pipeline_mode<synchronous>, transform_indices = @transform_3, window_bounds = array<i64: 24, 32>}, {pipeline_mode = #tpu.pipeline_mode<synchronous>, transform_indices = @transform_4, window_bounds = array<i64: 4, 32>}, {pipeline_mode = #tpu.pipeline_mode<synchronous>, transform_indices = @transform_5, window_bounds = array<i64: 32, 32>}, {pipeline_mode = #tpu.pipeline_mode<synchronous>, transform_indices = @transform_6, window_bounds = array<i64: 32, 32>}, {pipeline_mode = #tpu.pipeline_mode<synchronous>, transform_indices = @transform_7, window_bounds = array<i64: 8, 32>}, {pipeline_mode = #tpu.pipeline_mode<synchronous>, transform_indices = @transform_8, window_bounds = array<i64: 12, 32>}, {transform_indices = @transform_9, window_bounds = array<i64: 1, 8, 32>}]} {
    %c0 = arith.constant 0 : index
    %c0_0 = arith.constant 0 : index
    %0 = vector.load %arg9[%c0, %c0_0] : memref<12x32xf32, #tpu.memory_space<vmem>>, vector<12x32xf32>
    %c0_1 = arith.constant 0 : index
    %c0_2 = arith.constant 0 : index
    %1 = vector.load %arg3[%c0_1, %c0_2] : memref<2x4xf32, #tpu.memory_space<vmem>>, vector<2x4xf32>
    %c0_3 = arith.constant 0 : index
    %c0_4 = arith.constant 0 : index
    %c0_5 = arith.constant 0 : index
    %2 = vector.load %arg1[%c0_3, %c0_4, %c0_5] : memref<1x8x24xf32, #tpu.memory_space<vmem>>, vector<1x8x24xf32>
    %3 = vector.shape_cast %2 : vector<1x8x24xf32> to vector<8x24xf32>
    %c0_6 = arith.constant 0 : index
    %c0_7 = arith.constant 0 : index
    %c0_8 = arith.constant 0 : index
    %4 = vector.load %arg2[%c0_6, %c0_7, %c0_8] : memref<1x8x4xf32, #tpu.memory_space<vmem>>, vector<1x8x4xf32>
    %5 = vector.shape_cast %4 : vector<1x8x4xf32> to vector<8x4xf32>
    %c0_9 = arith.constant 0 : index
    %c0_10 = arith.constant 0 : index
    %6 = vector.load %arg4[%c0_9, %c0_10] : memref<24x32xbf16, #tpu.memory_space<vmem>>, vector<24x32xbf16>
    %7 = vector.extract_strided_slice %0 {offsets = [0, 0], sizes = [1, 32], strides = [1, 1]} : vector<12x32xf32> to vector<1x32xf32>
    %8 = arith.truncf %3 : vector<8x24xf32> to vector<8x24xbf16>
    %cst = arith.constant dense<0.000000e+00> : vector<8x32xf32>
    %9 = tpu.matmul %8, %6, %cst {dimension_numbers = #tpu.dot_dimension_numbers<[1], [0], [0], [1], [0, 0, 1, 1], [], []>} : vector<8x24xbf16>, vector<24x32xbf16>, vector<8x32xf32> -> vector<8x32xf32>
    %10 = vector.broadcast %7 : vector<1x32xf32> to vector<8x32xf32>
    %11 = arith.addf %9, %10 : vector<8x32xf32>
    %12 = vector.extract_strided_slice %0 {offsets = [1, 0], sizes = [1, 32], strides = [1, 1]} : vector<12x32xf32> to vector<1x32xf32>
    %13 = vector.extract_strided_slice %0 {offsets = [2, 0], sizes = [1, 32], strides = [1, 1]} : vector<12x32xf32> to vector<1x32xf32>
    %cst_11 = arith.constant dense<0.000000e+00> : vector<8xf32>
    %14 = vector.multi_reduction <add>, %11, %cst_11 [1] : vector<8x32xf32> to vector<8xf32>
    %15 = vector.shape_cast %14 : vector<8xf32> to vector<8x1xf32>
    %cst_12 = arith.constant 3.200000e+01 : f32
    %16 = vector.broadcast %cst_12 : f32 to vector<8x1xf32>
    %17 = arith.divf %15, %16 : vector<8x1xf32>
    %18 = vector.broadcast %17 : vector<8x1xf32> to vector<8x32xf32>
    %19 = arith.subf %11, %18 : vector<8x32xf32>
    %20 = arith.mulf %19, %19 : vector<8x32xf32>
    %cst_13 = arith.constant dense<0.000000e+00> : vector<8xf32>
    %21 = vector.multi_reduction <add>, %20, %cst_13 [1] : vector<8x32xf32> to vector<8xf32>
    %22 = vector.shape_cast %21 : vector<8xf32> to vector<8x1xf32>
    %cst_14 = arith.constant 3.200000e+01 : f32
    %23 = vector.broadcast %cst_14 : f32 to vector<8x1xf32>
    %24 = arith.divf %22, %23 : vector<8x1xf32>
    %25 = vector.broadcast %17 : vector<8x1xf32> to vector<8x32xf32>
    %26 = arith.subf %11, %25 : vector<8x32xf32>
    %cst_15 = arith.constant 9.99999974E-6 : f32
    %27 = vector.broadcast %cst_15 : f32 to vector<8x1xf32>
    %28 = arith.addf %24, %27 : vector<8x1xf32>
    %29 = math.rsqrt %28 : vector<8x1xf32>
    %30 = vector.broadcast %29 : vector<8x1xf32> to vector<8x32xf32>
    %31 = arith.mulf %26, %30 : vector<8x32xf32>
    %32 = vector.broadcast %12 : vector<1x32xf32> to vector<8x32xf32>
    %33 = arith.mulf %31, %32 : vector<8x32xf32>
    %34 = vector.broadcast %13 : vector<1x32xf32> to vector<8x32xf32>
    %35 = arith.addf %33, %34 : vector<8x32xf32>
    %36 = vector.extract_strided_slice %1 {offsets = [0, 0], sizes = [1, 4], strides = [1, 1]} : vector<2x4xf32> to vector<1x4xf32>
    %37 = vector.broadcast %36 : vector<1x4xf32> to vector<8x4xf32>
    %38 = arith.mulf %5, %37 : vector<8x4xf32>
    %39 = vector.extract_strided_slice %1 {offsets = [1, 0], sizes = [1, 4], strides = [1, 1]} : vector<2x4xf32> to vector<1x4xf32>
    %40 = vector.broadcast %39 : vector<1x4xf32> to vector<8x4xf32>
    %41 = arith.addf %38, %40 : vector<8x4xf32>
    %c0_16 = arith.constant 0 : index
    %c0_17 = arith.constant 0 : index
    %42 = vector.load %arg5[%c0_16, %c0_17] : memref<4x32xbf16, #tpu.memory_space<vmem>>, vector<4x32xbf16>
    %43 = vector.extract_strided_slice %0 {offsets = [3, 0], sizes = [1, 32], strides = [1, 1]} : vector<12x32xf32> to vector<1x32xf32>
    %44 = arith.truncf %41 : vector<8x4xf32> to vector<8x4xbf16>
    %cst_18 = arith.constant dense<0.000000e+00> : vector<8x32xf32>
    %45 = tpu.matmul %44, %42, %cst_18 {dimension_numbers = #tpu.dot_dimension_numbers<[1], [0], [0], [1], [0, 0, 1, 1], [], []>} : vector<8x4xbf16>, vector<4x32xbf16>, vector<8x32xf32> -> vector<8x32xf32>
    %46 = vector.broadcast %43 : vector<1x32xf32> to vector<8x32xf32>
    %47 = arith.addf %45, %46 : vector<8x32xf32>
    %48 = vector.extract_strided_slice %0 {offsets = [4, 0], sizes = [1, 32], strides = [1, 1]} : vector<12x32xf32> to vector<1x32xf32>
    %49 = vector.extract_strided_slice %0 {offsets = [5, 0], sizes = [1, 32], strides = [1, 1]} : vector<12x32xf32> to vector<1x32xf32>
    %cst_19 = arith.constant dense<0.000000e+00> : vector<8xf32>
    %50 = vector.multi_reduction <add>, %47, %cst_19 [1] : vector<8x32xf32> to vector<8xf32>
    %51 = vector.shape_cast %50 : vector<8xf32> to vector<8x1xf32>
    %cst_20 = arith.constant 3.200000e+01 : f32
    %52 = vector.broadcast %cst_20 : f32 to vector<8x1xf32>
    %53 = arith.divf %51, %52 : vector<8x1xf32>
    %54 = vector.broadcast %53 : vector<8x1xf32> to vector<8x32xf32>
    %55 = arith.subf %47, %54 : vector<8x32xf32>
    %56 = arith.mulf %55, %55 : vector<8x32xf32>
    %cst_21 = arith.constant dense<0.000000e+00> : vector<8xf32>
    %57 = vector.multi_reduction <add>, %56, %cst_21 [1] : vector<8x32xf32> to vector<8xf32>
    %58 = vector.shape_cast %57 : vector<8xf32> to vector<8x1xf32>
    %cst_22 = arith.constant 3.200000e+01 : f32
    %59 = vector.broadcast %cst_22 : f32 to vector<8x1xf32>
    %60 = arith.divf %58, %59 : vector<8x1xf32>
    %61 = vector.broadcast %53 : vector<8x1xf32> to vector<8x32xf32>
    %62 = arith.subf %47, %61 : vector<8x32xf32>
    %cst_23 = arith.constant 9.99999974E-6 : f32
    %63 = vector.broadcast %cst_23 : f32 to vector<8x1xf32>
    %64 = arith.addf %60, %63 : vector<8x1xf32>
    %65 = math.rsqrt %64 : vector<8x1xf32>
    %66 = vector.broadcast %65 : vector<8x1xf32> to vector<8x32xf32>
    %67 = arith.mulf %62, %66 : vector<8x32xf32>
    %68 = vector.broadcast %48 : vector<1x32xf32> to vector<8x32xf32>
    %69 = arith.mulf %67, %68 : vector<8x32xf32>
    %70 = vector.broadcast %49 : vector<1x32xf32> to vector<8x32xf32>
    %71 = arith.addf %69, %70 : vector<8x32xf32>
    %cst_24 = arith.constant 0.000000e+00 : f32
    %72 = vector.broadcast %cst_24 : f32 to vector<8x32xf32>
    %73 = arith.maximumf %35, %72 : vector<8x32xf32>
    %c0_25 = arith.constant 0 : index
    %c0_26 = arith.constant 0 : index
    %74 = vector.load %arg6[%c0_25, %c0_26] : memref<32x32xbf16, #tpu.memory_space<vmem>>, vector<32x32xbf16>
    %75 = arith.truncf %73 : vector<8x32xf32> to vector<8x32xbf16>
    %cst_27 = arith.constant dense<0.000000e+00> : vector<8x32xf32>
    %76 = tpu.matmul %75, %74, %cst_27 {dimension_numbers = #tpu.dot_dimension_numbers<[1], [0], [0], [1], [0, 0, 1, 1], [], []>} : vector<8x32xbf16>, vector<32x32xbf16>, vector<8x32xf32> -> vector<8x32xf32>
    %cst_28 = arith.constant 0.000000e+00 : f32
    %77 = vector.broadcast %cst_28 : f32 to vector<8x32xf32>
    %78 = arith.maximumf %71, %77 : vector<8x32xf32>
    %c0_29 = arith.constant 0 : index
    %c0_30 = arith.constant 0 : index
    %79 = vector.load %arg7[%c0_29, %c0_30] : memref<32x32xbf16, #tpu.memory_space<vmem>>, vector<32x32xbf16>
    %80 = arith.truncf %78 : vector<8x32xf32> to vector<8x32xbf16>
    %cst_31 = arith.constant dense<0.000000e+00> : vector<8x32xf32>
    %81 = tpu.matmul %80, %79, %cst_31 {dimension_numbers = #tpu.dot_dimension_numbers<[1], [0], [0], [1], [0, 0, 1, 1], [], []>} : vector<8x32xbf16>, vector<32x32xbf16>, vector<8x32xf32> -> vector<8x32xf32>
    %82 = arith.addf %76, %81 : vector<8x32xf32>
    %83 = vector.extract_strided_slice %0 {offsets = [6, 0], sizes = [1, 32], strides = [1, 1]} : vector<12x32xf32> to vector<1x32xf32>
    %84 = vector.broadcast %83 : vector<1x32xf32> to vector<8x32xf32>
    %85 = arith.addf %82, %84 : vector<8x32xf32>
    %86 = vector.extract_strided_slice %0 {offsets = [7, 0], sizes = [1, 32], strides = [1, 1]} : vector<12x32xf32> to vector<1x32xf32>
    %87 = vector.extract_strided_slice %0 {offsets = [8, 0], sizes = [1, 32], strides = [1, 1]} : vector<12x32xf32> to vector<1x32xf32>
    %cst_32 = arith.constant dense<0.000000e+00> : vector<8xf32>
    %88 = vector.multi_reduction <add>, %85, %cst_32 [1] : vector<8x32xf32> to vector<8xf32>
    %89 = vector.shape_cast %88 : vector<8xf32> to vector<8x1xf32>
    %cst_33 = arith.constant 3.200000e+01 : f32
    %90 = vector.broadcast %cst_33 : f32 to vector<8x1xf32>
    %91 = arith.divf %89, %90 : vector<8x1xf32>
    %92 = vector.broadcast %91 : vector<8x1xf32> to vector<8x32xf32>
    %93 = arith.subf %85, %92 : vector<8x32xf32>
    %94 = arith.mulf %93, %93 : vector<8x32xf32>
    %cst_34 = arith.constant dense<0.000000e+00> : vector<8xf32>
    %95 = vector.multi_reduction <add>, %94, %cst_34 [1] : vector<8x32xf32> to vector<8xf32>
    %96 = vector.shape_cast %95 : vector<8xf32> to vector<8x1xf32>
    %cst_35 = arith.constant 3.200000e+01 : f32
    %97 = vector.broadcast %cst_35 : f32 to vector<8x1xf32>
    %98 = arith.divf %96, %97 : vector<8x1xf32>
    %99 = vector.broadcast %91 : vector<8x1xf32> to vector<8x32xf32>
    %100 = arith.subf %85, %99 : vector<8x32xf32>
    %cst_36 = arith.constant 9.99999974E-6 : f32
    %101 = vector.broadcast %cst_36 : f32 to vector<8x1xf32>
    %102 = arith.addf %98, %101 : vector<8x1xf32>
    %103 = math.rsqrt %102 : vector<8x1xf32>
    %104 = vector.broadcast %103 : vector<8x1xf32> to vector<8x32xf32>
    %105 = arith.mulf %100, %104 : vector<8x32xf32>
    %106 = vector.broadcast %86 : vector<1x32xf32> to vector<8x32xf32>
    %107 = arith.mulf %105, %106 : vector<8x32xf32>
    %108 = vector.broadcast %87 : vector<1x32xf32> to vector<8x32xf32>
    %109 = arith.addf %107, %108 : vector<8x32xf32>
    %110 = vector.shape_cast %109 : vector<8x32xf32> to vector<1x8x32xf32>
    %c0_37 = arith.constant 0 : index
    %c0_38 = arith.constant 0 : index
    %111 = vector.load %arg8[%c0_37, %c0_38] : memref<8x32xf32, #tpu.memory_space<vmem>>, vector<8x32xf32>
    %112 = vector.shape_cast %111 : vector<8x32xf32> to vector<1x8x32xf32>
    %113 = arith.addf %110, %112 : vector<1x8x32xf32>
    %114 = vector.extract_strided_slice %0 {offsets = [9, 0], sizes = [1, 32], strides = [1, 1]} : vector<12x32xf32> to vector<1x32xf32>
    %115 = vector.shape_cast %114 : vector<1x32xf32> to vector<1x1x32xf32>
    %116 = vector.broadcast %115 : vector<1x1x32xf32> to vector<1x8x32xf32>
    %117 = arith.addf %113, %116 : vector<1x8x32xf32>
    %118 = vector.extract_strided_slice %0 {offsets = [10, 0], sizes = [1, 32], strides = [1, 1]} : vector<12x32xf32> to vector<1x32xf32>
    %119 = vector.extract_strided_slice %0 {offsets = [11, 0], sizes = [1, 32], strides = [1, 1]} : vector<12x32xf32> to vector<1x32xf32>
    %cst_39 = arith.constant dense<0.000000e+00> : vector<1x8xf32>
    %120 = vector.multi_reduction <add>, %117, %cst_39 [2] : vector<1x8x32xf32> to vector<1x8xf32>
    %121 = vector.shape_cast %120 : vector<1x8xf32> to vector<1x8x1xf32>
    %cst_40 = arith.constant 3.200000e+01 : f32
    %122 = vector.broadcast %cst_40 : f32 to vector<1x8x1xf32>
    %123 = arith.divf %121, %122 : vector<1x8x1xf32>
    %124 = vector.broadcast %123 : vector<1x8x1xf32> to vector<1x8x32xf32>
    %125 = arith.subf %117, %124 : vector<1x8x32xf32>
    %126 = arith.mulf %125, %125 : vector<1x8x32xf32>
    %cst_41 = arith.constant dense<0.000000e+00> : vector<1x8xf32>
    %127 = vector.multi_reduction <add>, %126, %cst_41 [2] : vector<1x8x32xf32> to vector<1x8xf32>
    %128 = vector.shape_cast %127 : vector<1x8xf32> to vector<1x8x1xf32>
    %cst_42 = arith.constant 3.200000e+01 : f32
    %129 = vector.broadcast %cst_42 : f32 to vector<1x8x1xf32>
    %130 = arith.divf %128, %129 : vector<1x8x1xf32>
    %131 = vector.broadcast %123 : vector<1x8x1xf32> to vector<1x8x32xf32>
    %132 = arith.subf %117, %131 : vector<1x8x32xf32>
    %cst_43 = arith.constant 9.99999996E-13 : f32
    %133 = vector.broadcast %cst_43 : f32 to vector<1x8x1xf32>
    %134 = arith.addf %130, %133 : vector<1x8x1xf32>
    %135 = math.rsqrt %134 : vector<1x8x1xf32>
    %136 = vector.broadcast %135 : vector<1x8x1xf32> to vector<1x8x32xf32>
    %137 = arith.mulf %132, %136 : vector<1x8x32xf32>
    %138 = vector.shape_cast %118 : vector<1x32xf32> to vector<1x1x32xf32>
    %139 = vector.broadcast %138 : vector<1x1x32xf32> to vector<1x8x32xf32>
    %140 = arith.mulf %137, %139 : vector<1x8x32xf32>
    %141 = vector.shape_cast %119 : vector<1x32xf32> to vector<1x1x32xf32>
    %142 = vector.broadcast %141 : vector<1x1x32xf32> to vector<1x8x32xf32>
    %143 = arith.addf %140, %142 : vector<1x8x32xf32>
    %c0_44 = arith.constant 0 : index
    %c0_45 = arith.constant 0 : index
    %c0_46 = arith.constant 0 : index
    %144 = vector.load %arg10[%c0_44, %c0_45, %c0_46] : memref<1x8x32xf32, #tpu.memory_space<vmem>>, vector<1x8x32xf32>
    tpu.vector_store %arg10[%c0_44, %c0_45, %c0_46], %143 {strides = array<i32>} : memref<1x8x32xf32, #tpu.memory_space<vmem>>, vector<1x8x32xf32>,
    return
  }
  func.func @transform_0(%arg0: i32) -> (i32, i32, i32) {
    %c0_i32 = arith.constant 0 : i32
    %c0_i32_0 = arith.constant 0 : i32
    %c0_i32_1 = arith.constant 0 : i32
    return %arg0, %c0_i32, %c0_i32_0 : i32, i32, i32
  }
  func.func @transform_1(%arg0: i32) -> (i32, i32, i32) {
    %c0_i32 = arith.constant 0 : i32
    %c0_i32_0 = arith.constant 0 : i32
    %c0_i32_1 = arith.constant 0 : i32
    return %arg0, %c0_i32, %c0_i32_0 : i32, i32, i32
  }
  func.func @transform_2(%arg0: i32) -> (i32, i32) {
    %c0_i32 = arith.constant 0 : i32
    %c0_i32_0 = arith.constant 0 : i32
    %c0_i32_1 = arith.constant 0 : i32
    return %c0_i32, %c0_i32_0 : i32, i32
  }
  func.func @transform_3(%arg0: i32) -> (i32, i32) {
    %c0_i32 = arith.constant 0 : i32
    %c0_i32_0 = arith.constant 0 : i32
    %c0_i32_1 = arith.constant 0 : i32
    return %c0_i32, %c0_i32_0 : i32, i32
  }
  func.func @transform_4(%arg0: i32) -> (i32, i32) {
    %c0_i32 = arith.constant 0 : i32
    %c0_i32_0 = arith.constant 0 : i32
    %c0_i32_1 = arith.constant 0 : i32
    return %c0_i32, %c0_i32_0 : i32, i32
  }
  func.func @transform_5(%arg0: i32) -> (i32, i32) {
    %c0_i32 = arith.constant 0 : i32
    %c0_i32_0 = arith.constant 0 : i32
    %c0_i32_1 = arith.constant 0 : i32
    return %c0_i32, %c0_i32_0 : i32, i32
  }
  func.func @transform_6(%arg0: i32) -> (i32, i32) {
    %c0_i32 = arith.constant 0 : i32
    %c0_i32_0 = arith.constant 0 : i32
    %c0_i32_1 = arith.constant 0 : i32
    return %c0_i32, %c0_i32_0 : i32, i32
  }
  func.func @transform_7(%arg0: i32) -> (i32, i32) {
    %c0_i32 = arith.constant 0 : i32
    %c0_i32_0 = arith.constant 0 : i32
    %c0_i32_1 = arith.constant 0 : i32
    return %c0_i32, %c0_i32_0 : i32, i32
  }
  func.func @transform_8(%arg0: i32) -> (i32, i32) {
    %c0_i32 = arith.constant 0 : i32
    %c0_i32_0 = arith.constant 0 : i32
    %c0_i32_1 = arith.constant 0 : i32
    return %c0_i32, %c0_i32_0 : i32, i32
  }
  func.func @transform_9(%arg0: i32) -> (i32, i32, i32) {
    %c0_i32 = arith.constant 0 : i32
    %c0_i32_0 = arith.constant 0 : i32
    %c0_i32_1 = arith.constant 0 : i32
    return %arg0, %c0_i32, %c0_i32_0 : i32, i32, i32
  }
}

</mosaic_0001>

<llo_original>
// kernel: tpu_custom_call.1
$region0: #{tpu_custom_call.1}
  #allocation0 [shape = 'u32[]', space=smem, size = 0x4, offset = 0x4, fixed_abs, tag = 'smem constant byte address 0x4 - core index']
  #allocation1 [shape = 'u32[144,128]{1,0:T(1,128)}', space=vmem, size = 0x12000, scoped, tag = 'internal scratch']
  %s0 = inlined_call_operand.vmem [shape: f32[2,8,24], index: 0, kind: input, shape index: {}]
  %s1 = inlined_call_operand.vmem [shape: f32[2,8,4], index: 1, kind: input, shape index: {}]
  %s2 = inlined_call_operand.hbm [shape: f32[2,4], index: 2, kind: input, shape index: {}]
  %s3 = inlined_call_operand.hbm [shape: bf16[24,32], index: 3, kind: input, shape index: {}]
  %s4 = inlined_call_operand.hbm [shape: bf16[4,32], index: 4, kind: input, shape index: {}]
  %s5 = inlined_call_operand.vmem [shape: bf16[32,32], index: 5, kind: input, shape index: {}]
  %s6 = inlined_call_operand.hbm [shape: bf16[32,32], index: 6, kind: input, shape index: {}]
  %s7 = inlined_call_operand.hbm [shape: f32[8,32], index: 7, kind: input, shape index: {}]
  %s8 = inlined_call_operand.hbm [shape: f32[12,32], index: 8, kind: input, shape index: {}]
  %s9 = inlined_call_operand.hbm [shape: f32[2,8,32], index: 9, kind: output, shape index: {}]
  %s10 = sld [smem:[#allocation0]]
  $region93: #{tpu_custom_call.1} parent=0
    _
  %s12 = ssub.s32 1, %s10
  %s13 = scalar_select 0, %s12, %s10
  $region1: #{tpu_custom_call.1} parent=0
    #allocation2 [shape = 'u8[1024]{0}', space=vmem, size = 0x400, scoped, tag = 'input window, operand 2, single buffered']
    #allocation3 [shape = 's32[2]{0}', space=sflag, size = 0x8, scoped, tag = 'scoped memory for tpu_custom_call.1']
    #allocation4 [shape = 's32[2]{0}', space=sflag, size = 0x8, scoped, tag = 'scoped memory for tpu_custom_call.1']
    #allocation5 [shape = 'u8[6144]{0}', space=vmem, size = 0x1800, scoped, tag = 'input window, operand 3, single buffered']
    #allocation6 [shape = 's32[1]{0}', space=sflag, size = 0x4, scoped, tag = 'scoped memory for tpu_custom_call.1']
    #allocation7 [shape = 'u8[1024]{0}', space=vmem, size = 0x400, scoped, tag = 'input window, operand 4, single buffered']
    #allocation8 [shape = 'u8[8192]{0}', space=vmem, size = 0x2000, scoped, tag = 'input window, operand 6, single buffered']
    #allocation9 [shape = 's32[1]{0}', space=sflag, size = 0x4, scoped, tag = 'scoped memory for tpu_custom_call.1']
    #allocation10 [shape = 'u8[4096]{0}', space=vmem, size = 0x1000, scoped, tag = 'input window, operand 7, single buffered']
    #allocation11 [shape = 'u8[8192]{0}', space=vmem, size = 0x2000, scoped, tag = 'input window, operand 8, single buffered']
    #allocation12 [shape = 's32[1]{0}', space=sflag, size = 0x4, scoped, tag = 'scoped memory for tpu_custom_call.1']
    #allocation13 [shape = 'u8[8192]{0}', space=vmem, size = 0x2000, scoped, tag = 'output window, operand 0']
    %14 = vsyncpa [#allocation3], 0
    %15 = vsyncpa [#allocation6], 0
    %16 = vsyncpa [#allocation9], 0
    %17 = vsyncpa [#allocation12], 0
    %18 = vsyncpa [#allocation4], 0
    %s19 = scalar_lea.sflag [#allocation4], 1
    %20 = vsyncpa %s19, 0
    loop: start=0, step=1, limit=4
    $region2: #{tpu_custom_call.1} parent=1 // loop_pre_header
      _
    $region3: #{tpu_custom_call.1} parent=1 // loop_header
      %s22 = sphi 0, %s26
      %p23 = scmp.ge.s32.totalorder %s22, 4
      %s32 = sphi 0, %s34
      %s35 = sphi 0, %s32
      %s36 = sphi 0, %s35
      %s52 = sphi 0, %s36
      %s58 = sphi 0, %s60
      %s61 = sphi 0, %s58
      %s62 = sphi 0, %s61
      %s78 = sphi 0, %s62
      %s82 = sphi 0, %s82
      %s84 = sphi 0, %s82
      %s85 = sphi 0, %s84
      %s99 = sphi 0, %s85
      %s103 = sphi 0, %s103
      %s105 = sphi 0, %s103
      %s106 = sphi 0, %s105
      %s120 = sphi 0, %s106
      %s124 = sphi 0, %s124
      %s126 = sphi 0, %s124
      %s127 = sphi 0, %s126
      %s141 = sphi 0, %s127
      %s145 = sphi 0, %s145
      %s147 = sphi 0, %s145
      %s148 = sphi 0, %s147
      %s162 = sphi 0, %s148
      %s166 = sphi 0, %s166
      %s168 = sphi 0, %s166
      %s169 = sphi 0, %s168
      %s183 = sphi 0, %s169
      %s187 = sphi 0, %s187
      %s189 = sphi 0, %s187
      %s190 = sphi 0, %s189
      %s204 = sphi 0, %s190
      %s208 = sphi 0, %s208
      %s210 = sphi 0, %s208
      %s211 = sphi 0, %s210
      %s225 = sphi 0, %s211
      %s231 = sphi 0, %s233
      %s234 = sphi 0, %s231
      %s235 = sphi 0, %s234
      %s251 = sphi 0, %s235
    $region4: #{tpu_custom_call.1} parent=1 // loop_header_branch
      %25 = sbr.rel (%p23) target = $region8
    $region5: #{tpu_custom_call.1} parent=1 // loop_body
      %s27 = ssub.s32 %s22, 1
      %s28 = ssub.s32 %s22, 2
      %s29 = sadd.s32 %s22, 1
      %s30 = ssub.s32 %s22, %s29
      %p31 = scmp.eq.s32.totalorder %s30, 0
      %s33 = sadd.s32 %s32, 1
      %s34 = scalar_select %p31, %s32, %s33
      %p37 = pneg %p31
      %p38 = scmp.eq.s32.totalorder %s22, 1
      %p39 = por %p37, %p38
      %p40 = scmp.ne.s32.totalorder %s32, %s35
      %p41 = scmp.eq.s32.totalorder %s22, 0
      %p42 = por %p40, %p41
      %p43 = scmp.ne.s32.totalorder %s32, %s35
      %p44 = scmp.eq.s32.totalorder %s27, 1
      %p45 = por %p43, %p44
      %p46 = scmp.ne.s32.totalorder %s35, %s36
      %p47 = scmp.eq.s32.totalorder %s27, 0
      %p48 = por %p46, %p47
      %p49 = scmp.ne.s32.totalorder %s35, %s36
      %p50 = scmp.eq.s32.totalorder %s28, 1
      %p51 = por %p49, %p50
      %p53 = scmp.ne.s32.totalorder %s36, %s52
      %p54 = scmp.eq.s32.totalorder %s28, 0
      %p55 = por %p53, %p54
      %s56 = ssub.s32 %s22, %s29
      %p57 = scmp.eq.s32.totalorder %s56, 0
      %s59 = sadd.s32 %s58, 1
      %s60 = scalar_select %p57, %s58, %s59
      %p63 = pneg %p57
      %p64 = scmp.eq.s32.totalorder %s22, 1
      %p65 = por %p63, %p64
      %p66 = scmp.ne.s32.totalorder %s58, %s61
      %p67 = scmp.eq.s32.totalorder %s22, 0
      %p68 = por %p66, %p67
      %p69 = scmp.ne.s32.totalorder %s58, %s61
      %p70 = scmp.eq.s32.totalorder %s27, 1
      %p71 = por %p69, %p70
      %p72 = scmp.ne.s32.totalorder %s61, %s62
      %p73 = scmp.eq.s32.totalorder %s27, 0
      %p74 = por %p72, %p73
      %p75 = scmp.ne.s32.totalorder %s61, %s62
      %p76 = scmp.eq.s32.totalorder %s28, 1
      %p77 = por %p75, %p76
      %p79 = scmp.ne.s32.totalorder %s62, %s78
      %p80 = scmp.eq.s32.totalorder %s28, 0
      %p81 = por %p79, %p80
      %s83 = sadd.s32 %s82, 1
      %p86 = scmp.eq.s32.totalorder %s22, 1
      %p87 = scmp.ne.s32.totalorder %s82, %s84
      %p88 = scmp.eq.s32.totalorder %s22, 0
      %p89 = por %p87, %p88
      %p90 = scmp.ne.s32.totalorder %s82, %s84
      %p91 = scmp.eq.s32.totalorder %s27, 1
      %p92 = por %p90, %p91
      %p93 = scmp.ne.s32.totalorder %s84, %s85
      %p94 = scmp.eq.s32.totalorder %s27, 0
      %p95 = por %p93, %p94
      %p96 = scmp.ne.s32.totalorder %s84, %s85
      %p97 = scmp.eq.s32.totalorder %s28, 1
      %p98 = por %p96, %p97
      %p100 = scmp.ne.s32.totalorder %s85, %s99
      %p101 = scmp.eq.s32.totalorder %s28, 0
      %p102 = por %p100, %p101
      %s104 = sadd.s32 %s103, 1
      %p107 = scmp.eq.s32.totalorder %s22, 1
      %p108 = scmp.ne.s32.totalorder %s103, %s105
      %p109 = scmp.eq.s32.totalorder %s22, 0
      %p110 = por %p108, %p109
      %p111 = scmp.ne.s32.totalorder %s103, %s105
      %p112 = scmp.eq.s32.totalorder %s27, 1
      %p113 = por %p111, %p112
      %p114 = scmp.ne.s32.totalorder %s105, %s106
      %p115 = scmp.eq.s32.totalorder %s27, 0
      %p116 = por %p114, %p115
      %p117 = scmp.ne.s32.totalorder %s105, %s106
      %p118 = scmp.eq.s32.totalorder %s28, 1
      %p119 = por %p117, %p118
      %p121 = scmp.ne.s32.totalorder %s106, %s120
      %p122 = scmp.eq.s32.totalorder %s28, 0
      %p123 = por %p121, %p122
      %s125 = sadd.s32 %s124, 1
      %p128 = scmp.eq.s32.totalorder %s22, 1
      %p129 = scmp.ne.s32.totalorder %s124, %s126
      %p130 = scmp.eq.s32.totalorder %s22, 0
      %p131 = por %p129, %p130
      %p132 = scmp.ne.s32.totalorder %s124, %s126
      %p133 = scmp.eq.s32.totalorder %s27, 1
      %p134 = por %p132, %p133
      %p135 = scmp.ne.s32.totalorder %s126, %s127
      %p136 = scmp.eq.s32.totalorder %s27, 0
      %p137 = por %p135, %p136
      %p138 = scmp.ne.s32.totalorder %s126, %s127
      %p139 = scmp.eq.s32.totalorder %s28, 1
      %p140 = por %p138, %p139
      %p142 = scmp.ne.s32.totalorder %s127, %s141
      %p143 = scmp.eq.s32.totalorder %s28, 0
      %p144 = por %p142, %p143
      %s146 = sadd.s32 %s145, 1
      %p149 = scmp.eq.s32.totalorder %s22, 1
      %p150 = scmp.ne.s32.totalorder %s145, %s147
      %p151 = scmp.eq.s32.totalorder %s22, 0
      %p152 = por %p150, %p151
      %p153 = scmp.ne.s32.totalorder %s145, %s147
      %p154 = scmp.eq.s32.totalorder %s27, 1
      %p155 = por %p153, %p154
      %p156 = scmp.ne.s32.totalorder %s147, %s148
      %p157 = scmp.eq.s32.totalorder %s27, 0
      %p158 = por %p156, %p157
      %p159 = scmp.ne.s32.totalorder %s147, %s148
      %p160 = scmp.eq.s32.totalorder %s28, 1
      %p161 = por %p159, %p160
      %p163 = scmp.ne.s32.totalorder %s148, %s162
      %p164 = scmp.eq.s32.totalorder %s28, 0
      %p165 = por %p163, %p164
      %s167 = sadd.s32 %s166, 1
      %p170 = scmp.eq.s32.totalorder %s22, 1
      %p171 = scmp.ne.s32.totalorder %s166, %s168
      %p172 = scmp.eq.s32.totalorder %s22, 0
      %p173 = por %p171, %p172
      %p174 = scmp.ne.s32.totalorder %s166, %s168
      %p175 = scmp.eq.s32.totalorder %s27, 1
      %p176 = por %p174, %p175
      %p177 = scmp.ne.s32.totalorder %s168, %s169
      %p178 = scmp.eq.s32.totalorder %s27, 0
      %p179 = por %p177, %p178
      %p180 = scmp.ne.s32.totalorder %s168, %s169
      %p181 = scmp.eq.s32.totalorder %s28, 1
      %p182 = por %p180, %p181
      %p184 = scmp.ne.s32.totalorder %s169, %s183
      %p185 = scmp.eq.s32.totalorder %s28, 0
      %p186 = por %p184, %p185
      %s188 = sadd.s32 %s187, 1
      %p191 = scmp.eq.s32.totalorder %s22, 1
      %p192 = scmp.ne.s32.totalorder %s187, %s189
      %p193 = scmp.eq.s32.totalorder %s22, 0
      %p194 = por %p192, %p193
      %p195 = scmp.ne.s32.totalorder %s187, %s189
      %p196 = scmp.eq.s32.totalorder %s27, 1
      %p197 = por %p195, %p196
      %p198 = scmp.ne.s32.totalorder %s189, %s190
      %p199 = scmp.eq.s32.totalorder %s27, 0
      %p200 = por %p198, %p199
      %p201 = scmp.ne.s32.totalorder %s189, %s190
      %p202 = scmp.eq.s32.totalorder %s28, 1
      %p203 = por %p201, %p202
      %p205 = scmp.ne.s32.totalorder %s190, %s204
      %p206 = scmp.eq.s32.totalorder %s28, 0
      %p207 = por %p205, %p206
      %s209 = sadd.s32 %s208, 1
      %p212 = scmp.eq.s32.totalorder %s22, 1
      %p213 = scmp.ne.s32.totalorder %s208, %s210
      %p214 = scmp.eq.s32.totalorder %s22, 0
      %p215 = por %p213, %p214
      %p216 = scmp.ne.s32.totalorder %s208, %s210
      %p217 = scmp.eq.s32.totalorder %s27, 1
      %p218 = por %p216, %p217
      %p219 = scmp.ne.s32.totalorder %s210, %s211
      %p220 = scmp.eq.s32.totalorder %s27, 0
      %p221 = por %p219, %p220
      %p222 = scmp.ne.s32.totalorder %s210, %s211
      %p223 = scmp.eq.s32.totalorder %s28, 1
      %p224 = por %p222, %p223
      %p226 = scmp.ne.s32.totalorder %s211, %s225
      %p227 = scmp.eq.s32.totalorder %s28, 0
      %p228 = por %p226, %p227
      %s229 = ssub.s32 %s22, %s29
      %p230 = scmp.eq.s32.totalorder %s229, 0
      %s232 = sadd.s32 %s231, 1
      %s233 = scalar_select %p230, %s231, %s232
      %p236 = pneg %p230
      %p237 = scmp.eq.s32.totalorder %s22, 1
      %p238 = por %p236, %p237
      %p239 = scmp.ne.s32.totalorder %s231, %s234
      %p240 = scmp.eq.s32.totalorder %s22, 0
      %p241 = por %p239, %p240
      %p242 = scmp.ne.s32.totalorder %s231, %s234
      %p243 = scmp.eq.s32.totalorder %s27, 1
      %p244 = por %p242, %p243
      %p245 = scmp.ne.s32.totalorder %s234, %s235
      %p246 = scmp.eq.s32.totalorder %s27, 0
      %p247 = por %p245, %p246
      %p248 = scmp.ne.s32.totalorder %s234, %s235
      %p249 = scmp.eq.s32.totalorder %s28, 1
      %p250 = por %p248, %p249
      %p252 = scmp.ne.s32.totalorder %s235, %s251
      %p253 = scmp.eq.s32.totalorder %s28, 0
      %p254 = por %p252, %p253
      %p255 = scmp.le.s32.totalorder 1, %s22
      %p256 = scmp.lt.s32.totalorder %s22, 3
      %p257 = pnand %p255, %p256
      %p258 = pneg %p257
      // Predicated region
      $region9: #{tpu_custom_call.1} parent=5 // pred_check
        _
      $region10: #{tpu_custom_call.1} parent=5 // pred_check_branch
        %260 = sbr.rel (%p257) target = $region12
      $region11: #{tpu_custom_call.1} parent=5 // pred_region
        %s261 = ssub.s32 %s22, 1
        // Predicated region
        $region13: #{tpu_custom_call.1} parent=11 // pred_check
          %p262 = pneg %p95
        $region14: #{tpu_custom_call.1} parent=11 // pred_check_branch
          %264 = sbr.rel (%p262) target = $region16
        $region15: #{tpu_custom_call.1} parent=11 // pred_region
          %s266 = ssub.s32 32, 32
          %267 = vsyncadd [#allocation3], %s266
          %s269 = sshll.u32 [#allocation2], 4
          %s270 = int_to_ptr.vmem [resolvable:$true] %s269
          %272 = dma.hbm_to_vmem [thread:$0]  %s2, 32, %s270, [#allocation3]
        $region16: #{tpu_custom_call.1} parent=11 // pred_fallthru
          _
        // Predicated region
        $region17: #{tpu_custom_call.1} parent=11 // pred_check
          %p273 = pneg %p116
        $region18: #{tpu_custom_call.1} parent=11 // pred_check_branch
          %275 = sbr.rel (%p273) target = $region20
        $region19: #{tpu_custom_call.1} parent=11 // pred_region
          %s277 = ssub.s32 192, 192
          %278 = vsyncadd [#allocation6], %s277
          %s279 = sshll.u32 [#allocation5], 4
          %s280 = int_to_ptr.vmem [resolvable:$true] %s279
          %285 = dma.hbm_to_vmem [thread:$0]  %s3, 192, %s280, [#allocation6], 64, 64, 4
        $region20: #{tpu_custom_call.1} parent=11 // pred_fallthru
          _
        // Predicated region
        $region21: #{tpu_custom_call.1} parent=11 // pred_check
          %p286 = pneg %p137
        $region22: #{tpu_custom_call.1} parent=11 // pred_check_branch
          %288 = sbr.rel (%p286) target = $region24
        $region23: #{tpu_custom_call.1} parent=11 // pred_region
          %s290 = ssub.s32 32, 32
          %291 = vsyncadd [#allocation6], %s290
          %s293 = sshll.u32 [#allocation7], 4
          %s294 = int_to_ptr.vmem [resolvable:$true] %s293
          %296 = dma.hbm_to_vmem [thread:$0]  %s4, 32, %s294, [#allocation6]
        $region24: #{tpu_custom_call.1} parent=11 // pred_fallthru
          _
        // Predicated region
        $region25: #{tpu_custom_call.1} parent=11 // pred_check
          %p297 = pneg %p158
        $region26: #{tpu_custom_call.1} parent=11 // pred_check_branch
          %299 = sbr.rel (%p297) target = $region28
        $region27: #{tpu_custom_call.1} parent=11 // pred_region
          _
        $region28: #{tpu_custom_call.1} parent=11 // pred_fallthru
          _
        // Predicated region
        $region29: #{tpu_custom_call.1} parent=11 // pred_check
          %p300 = pneg %p179
        $region30: #{tpu_custom_call.1} parent=11 // pred_check_branch
          %302 = sbr.rel (%p300) target = $region32
        $region31: #{tpu_custom_call.1} parent=11 // pred_region
          %s304 = ssub.s32 256, 256
          %305 = vsyncadd [#allocation9], %s304
          %s306 = sshll.u32 [#allocation8], 4
          %s307 = int_to_ptr.vmem [resolvable:$true] %s306
          %312 = dma.hbm_to_vmem [thread:$0]  %s6, 256, %s307, [#allocation9], 64, 64, 4
        $region32: #{tpu_custom_call.1} parent=11 // pred_fallthru
          _
        // Predicated region
        $region33: #{tpu_custom_call.1} parent=11 // pred_check
          %p313 = pneg %p200
        $region34: #{tpu_custom_call.1} parent=11 // pred_check_branch
          %315 = sbr.rel (%p313) target = $region36
        $region35: #{tpu_custom_call.1} parent=11 // pred_region
          %s317 = ssub.s32 128, 128
          %318 = vsyncadd [#allocation9], %s317
          %s320 = sshll.u32 [#allocation10], 4
          %s321 = int_to_ptr.vmem [resolvable:$true] %s320
          %323 = dma.hbm_to_vmem [thread:$0]  %s7, 128, %s321, [#allocation9]
        $region36: #{tpu_custom_call.1} parent=11 // pred_fallthru
          _
        // Predicated region
        $region37: #{tpu_custom_call.1} parent=11 // pred_check
          %p324 = pneg %p221
        $region38: #{tpu_custom_call.1} parent=11 // pred_check_branch
          %326 = sbr.rel (%p324) target = $region40
        $region39: #{tpu_custom_call.1} parent=11 // pred_region
          %s328 = ssub.s32 256, 256
          %329 = vsyncadd [#allocation12], %s328
          %s330 = sshll.u32 [#allocation11], 4
          %s331 = int_to_ptr.vmem [resolvable:$true] %s330
          %336 = dma.hbm_to_vmem [thread:$0]  %s8, 256, %s331, [#allocation12], 128, 128, 8
        $region40: #{tpu_custom_call.1} parent=11 // pred_fallthru
          _
      $region12: #{tpu_custom_call.1} parent=5 // pred_fallthru
        _
      %p337 = scmp.lt.s32.totalorder %s22, 2
      // Predicated region
      $region41: #{tpu_custom_call.1} parent=5 // pred_check
        %p338 = pneg %p337
      $region42: #{tpu_custom_call.1} parent=5 // pred_check_branch
        %340 = sbr.rel (%p338) target = $region44
      $region43: #{tpu_custom_call.1} parent=5 // pred_region
        // Predicated region
        $region45: #{tpu_custom_call.1} parent=43 // pred_check
          %p341 = pneg %p42
        $region46: #{tpu_custom_call.1} parent=43 // pred_check_branch
          %343 = sbr.rel (%p341) target = $region48
        $region47: #{tpu_custom_call.1} parent=43 // pred_region
          %p344 = scmp.lt.s32.totalorder %s22, 1
          %s345 = scalar_select %p344, %s22, 1
          %s346 = smul.addr %s345, 8
          %s347 = scalar_lea.vmem %s0, %s346
        $region48: #{tpu_custom_call.1} parent=43 // pred_fallthru
          _
        // Predicated region
        $region49: #{tpu_custom_call.1} parent=43 // pred_check
          %p348 = pneg %p68
        $region50: #{tpu_custom_call.1} parent=43 // pred_check_branch
          %350 = sbr.rel (%p348) target = $region52
        $region51: #{tpu_custom_call.1} parent=43 // pred_region
          %p351 = scmp.lt.s32.totalorder %s22, 1
          %s352 = scalar_select %p351, %s22, 1
          %s353 = smul.addr %s352, 8
          %s354 = scalar_lea.vmem %s1, %s353
        $region52: #{tpu_custom_call.1} parent=43 // pred_fallthru
          _
      $region44: #{tpu_custom_call.1} parent=5 // pred_fallthru
        _
      %p355 = scmp.le.s32.totalorder 1, %s22
      %p356 = scmp.lt.s32.totalorder %s22, 3
      %p357 = pnand %p355, %p356
      %p358 = pneg %p357
      // Predicated region
      $region53: #{tpu_custom_call.1} parent=5 // pred_check
        _
      $region54: #{tpu_custom_call.1} parent=5 // pred_check_branch
        %360 = sbr.rel (%p357) target = $region56
      $region55: #{tpu_custom_call.1} parent=5 // pred_region
        %s361 = ssub.s32 %s22, 1
        // Predicated region
        $region57: #{tpu_custom_call.1} parent=55 // pred_check
          %p362 = pneg %p95
        $region58: #{tpu_custom_call.1} parent=55 // pred_check_branch
          %364 = sbr.rel (%p362) target = $region60
        $region59: #{tpu_custom_call.1} parent=55 // pred_region
          %365 = dma.done [#allocation3], 32
        $region60: #{tpu_custom_call.1} parent=55 // pred_fallthru
          _
        // Predicated region
        $region61: #{tpu_custom_call.1} parent=55 // pred_check
          %p366 = pneg %p116
        $region62: #{tpu_custom_call.1} parent=55 // pred_check_branch
          %368 = sbr.rel (%p366) target = $region64
        $region63: #{tpu_custom_call.1} parent=55 // pred_region
          %369 = dma.done [#allocation6], 192
        $region64: #{tpu_custom_call.1} parent=55 // pred_fallthru
          _
        // Predicated region
        $region65: #{tpu_custom_call.1} parent=55 // pred_check
          %p370 = pneg %p137
        $region66: #{tpu_custom_call.1} parent=55 // pred_check_branch
          %372 = sbr.rel (%p370) target = $region68
        $region67: #{tpu_custom_call.1} parent=55 // pred_region
          %373 = dma.done [#allocation6], 32
        $region68: #{tpu_custom_call.1} parent=55 // pred_fallthru
          _
        // Predicated region
        $region69: #{tpu_custom_call.1} parent=55 // pred_check
          %p374 = pneg %p179
        $region70: #{tpu_custom_call.1} parent=55 // pred_check_branch
          %376 = sbr.rel (%p374) target = $region72
        $region71: #{tpu_custom_call.1} parent=55 // pred_region
          %377 = dma.done [#allocation9], 256
        $region72: #{tpu_custom_call.1} parent=55 // pred_fallthru
          _
        // Predicated region
        $region73: #{tpu_custom_call.1} parent=55 // pred_check
          %p378 = pneg %p200
        $region74: #{tpu_custom_call.1} parent=55 // pred_check_branch
          %380 = sbr.rel (%p378) target = $region76
        $region75: #{tpu_custom_call.1} parent=55 // pred_region
          %381 = dma.done [#allocation9], 128
        $region76: #{tpu_custom_call.1} parent=55 // pred_fallthru
          _
        // Predicated region
        $region77: #{tpu_custom_call.1} parent=55 // pred_check
          %p382 = pneg %p221
        $region78: #{tpu_custom_call.1} parent=55 // pred_check_branch
          %384 = sbr.rel (%p382) target = $region80
        $region79: #{tpu_custom_call.1} parent=55 // pred_region
          %385 = dma.done [#allocation12], 256
        $region80: #{tpu_custom_call.1} parent=55 // pred_fallthru
          _
        %p386 = scmp.lt.s32.totalorder %s27, 1
        %s387 = scalar_select %p386, %s27, 1
        %s388 = smul.addr %s387, 8
        %s389 = scalar_lea.vmem %s0, %s388
        %p390 = pneg %p48
        %p391 = pneg %p45
        %p392 = scmp.lt.s32.totalorder %s27, 1
        %s393 = scalar_select %p392, %s27, 1
        %s394 = smul.addr %s393, 8
        %s395 = scalar_lea.vmem %s1, %s394
        %p396 = pneg %p74
        %p397 = pneg %p71
        %p398 = pneg %p95
        %p399 = pneg %p92
        %p400 = pneg %p116
        %p401 = pneg %p113
        %p402 = pneg %p137
        %p403 = pneg %p134
        %p404 = pneg %p158
        %p405 = pneg %p155
        %p406 = pneg %p179
        %p407 = pneg %p176
        %p408 = pneg %p200
        %p409 = pneg %p197
        %p410 = pneg %p221
        %p411 = pneg %p218
        %p412 = pneg %p247
        %p413 = pneg %p244
        %s414 = sand.u32 %s234, 1
        %s415 = scalar_lea.sflag [#allocation4], %s414
        %s416 = sand.u32 %s234, 1
        %s417 = smul.addr %s416, 8
        %s418 = scalar_lea.vmem [#allocation13], %s417
        %p419 = scmp.lt.s32.totalorder %s27, 1
        %s420 = scalar_select %p419, %s27, 1
        %s421 = smul.addr %s420, 8
        %s422 = scalar_lea.vmem %s0, %s421
        %p423 = scmp.lt.s32.totalorder %s27, 1
        %s424 = scalar_select %p423, %s27, 1
        %s425 = smul.addr %s424, 8
        %s426 = scalar_lea.vmem %s1, %s425
        %v428 = vld [vmem:[#allocation11] sm:$0xff]
        %v429 = vld [vmem:[#allocation11 + $0x8] sm:$0xf]
        %v430 = vld [vmem:[#allocation2] sm:$0x3]
        %v431 = vld [vmem:[%s422] sm:$0xff]
        %v432 = vld [vmem:[%s426] sm:$0xff]
        %v433 = vld [vmem:[#allocation5] sm:$0xf]
        %v434 = vld [vmem:[#allocation5 + $0x4] sm:$0xf]
        %v435 = vld [vmem:[#allocation5 + $0x8] sm:$0xf]
        %v436 = vpack.c.bf16 %v431, %v431
        %v437 = vlaneseq
        %v438 = vshrl.u32 %v437, 7
        %v439 = vsub.s32 0, %v438
        %v440 = vrot.slane %v428, %v439
        %v444 = vunpack.c.l.b16 %v433
        %v445 = vunpack.c.l.b16 %v434
        %v446 = vunpack.c.l.b16 %v435
        %v447 = vpack.c.b16 %v445, %v444
        %v448 = vpack.c.b16 %v446, %v446
        %vm450 = vcmask 195584
        %v452 = vsel %vm450, %v436, 0
        %vm454 = vcmask 1043456
        %v456 = vsel %vm454, %v448, 0
        %458 = vmatprep.subr.bf16.mxu0 0
        %459 = vmatpush1.bf16.msra.mxu0 0
        %460 = vmatprep.subr.bf16.mxu0 0
        %461 = vmatpush1.bf16.msra.mxu0 0
        %462 = vmatprep.subr.bf16.mxu0 0
        %463 = vmatpush1.bf16.msra.mxu0 0
        %464 = vmatprep.subr.bf16.mxu0 0
        %465 = vmatpush1.bf16.msra.mxu0 0
        %466 = vmatprep.subr.bf16.mxu0 0
        %467 = vmatpush1.bf16.msra.mxu0 0
        %468 = vmatprep.subr.bf16.mxu0 0
        %469 = vmatpush1.bf16.msra.mxu0 0
        %470 = vmatprep.subr.bf16.mxu0 0
        %471 = vmatpush1.bf16.msra.mxu0 %v456
        %472 = vmatprep.subr.bf16.mxu0 0
        %473 = vmatpush1.bf16.msra.mxu0 %v447
        %474 = vmatprep.subr.bf16.mxu0 0
        %475 = vmatpush2.bf16.msra.mxu0 0
        %476 = vmatprep.subr.bf16.mxu0 0
        %477 = vmatpush2.bf16.msra.mxu0 0
        %478 = vmatprep.subr.bf16.mxu0 0
        %479 = vmatpush2.bf16.msra.mxu0 0
        %480 = vmatprep.subr.bf16.mxu0 0
        %481 = vmatpush2.bf16.msra.mxu0 0
        %482 = vmatprep.subr.bf16.mxu0 0
        %483 = vmatpush2.bf16.msra.mxu0 0
        %484 = vmatprep.subr.bf16.mxu0 0
        %485 = vmatpush2.bf16.msra.mxu0 0
        %486 = vmatprep.subr.bf16.mxu0 0
        %487 = vmatpush2.bf16.msra.mxu0 0
        %488 = vmatprep.subr.bf16.mxu0 0
        %489 = vmatpush2.bf16.msra.mxu0 0
        %490 = vmatprep.mubr.bf16.mxu0 0
        %491 = vmatmul.mubr.bf16.gmra.mxu0 %v452
        %v492 = vpop.f32.mrf.mxu0
        %v493 = vadd.f32 %v440, %v492
        %v494 = vpop.f32.mrf.mxu0
        %v495 = vpop.f32.mrf.mxu0
        %v496 = vpop.f32.mrf.mxu0
        %497 = vdwg.mxu0
        %vm498 = vcmask 261120
        %v499 = vsel %vm498, %v493, 0.0
        %500 = vadd.xlane.f32.xlu0 %v499
        %v501 = vpop.xlane.xlu0 %500
        %v502 = vrcp.pop 32.0
        %v503 = vmul.f32 %v501, %v502
        %v504 = vsub.f32 %v493, %v503
        %v505 = vmul.f32 %v504, %v504
        %v506 = vsel %vm498, %v505, 0.0
        %507 = vadd.xlane.f32.xlu0 %v506
        %v508 = vpop.xlane.xlu0 %507
        %v509 = vmul.f32 %v508, %v502
        %v510 = vadd.f32 %v509, 1e-05
        %v511 = vrsqrt.pop %v510
        %v512 = vmul.f32 %v504, %v511
        %v513 = vlaneseq
        %v514 = vshrl.u32 %v513, 7
        %v515 = vsub.s32 1, %v514
        %v516 = vrot.slane %v428, %v515
        %v517 = vmul.f32 %v512, %v516
        %v518 = vlaneseq
        %v519 = vshrl.u32 %v518, 7
        %v520 = vsub.s32 2, %v519
        %v521 = vrot.slane %v428, %v520
        %v522 = vadd.f32 %v517, %v521
        %v523 = vlaneseq
        %v524 = vshrl.u32 %v523, 7
        %v525 = vsub.s32 0, %v524
        %v526 = vrot.slane %v430, %v525
        %v527 = vmul.f32 %v432, %v526
        %v528 = vlaneseq
        %v529 = vshrl.u32 %v528, 7
        %v530 = vsub.s32 1, %v529
        %v531 = vrot.slane %v430, %v530
        %v532 = vadd.f32 %v527, %v531
        %v533 = vld [vmem:[#allocation7] sm:$0x3]
        %v534 = vpack.c.bf16 %v532, %v532
        %v535 = vlaneseq
        %v536 = vshrl.u32 %v535, 7
        %v537 = vsub.s32 3, %v536
        %v538 = vrot.slane %v428, %v537
        %vm539 = vcmask 31744
        %v541 = vsel %vm539, %v534, 0
        %vm543 = vcmask 1041408
        %v545 = vsel %vm543, %v533, 0
        %547 = vmatprep.subr.bf16.mxu0 0
        %548 = vmatpush1.bf16.msra.mxu0 0
        %549 = vmatprep.subr.bf16.mxu0 0
        %550 = vmatpush1.bf16.msra.mxu0 0
        %551 = vmatprep.subr.bf16.mxu0 0
        %552 = vmatpush1.bf16.msra.mxu0 0
        %553 = vmatprep.subr.bf16.mxu0 0
        %554 = vmatpush1.bf16.msra.mxu0 0
        %555 = vmatprep.subr.bf16.mxu0 0
        %556 = vmatpush1.bf16.msra.mxu0 0
        %557 = vmatprep.subr.bf16.mxu0 0
        %558 = vmatpush1.bf16.msra.mxu0 0
        %559 = vmatprep.subr.bf16.mxu0 0
        %560 = vmatpush1.bf16.msra.mxu0 0
        %561 = vmatprep.subr.bf16.mxu0 0
        %562 = vmatpush1.bf16.msra.mxu0 %v545
        %563 = vmatprep.subr.bf16.mxu0 0
        %564 = vmatpush2.bf16.msra.mxu0 0
        %565 = vmatprep.subr.bf16.mxu0 0
        %566 = vmatpush2.bf16.msra.mxu0 0
        %567 = vmatprep.subr.bf16.mxu0 0
        %568 = vmatpush2.bf16.msra.mxu0 0
        %569 = vmatprep.subr.bf16.mxu0 0
        %570 = vmatpush2.bf16.msra.mxu0 0
        %571 = vmatprep.subr.bf16.mxu0 0
        %572 = vmatpush2.bf16.msra.mxu0 0
        %573 = vmatprep.subr.bf16.mxu0 0
        %574 = vmatpush2.bf16.msra.mxu0 0
        %575 = vmatprep.subr.bf16.mxu0 0
        %576 = vmatpush2.bf16.msra.mxu0 0
        %577 = vmatprep.subr.bf16.mxu0 0
        %578 = vmatpush2.bf16.msra.mxu0 0
        %579 = vmatprep.mubr.bf16.mxu0 0
        %580 = vmatmul.mubr.bf16.gmra.mxu0 %v541
        %v581 = vpop.f32.mrf.mxu0
        %v582 = vadd.f32 %v538, %v581
        %v583 = vpop.f32.mrf.mxu0
        %v584 = vpop.f32.mrf.mxu0
        %v585 = vpop.f32.mrf.mxu0
        %586 = vdwg.mxu0
        %v587 = vsel %vm498, %v582, 0.0
        %588 = vadd.xlane.f32.xlu0 %v587
        %v589 = vpop.xlane.xlu0 %588
        %v590 = vmul.f32 %v589, %v502
        %v591 = vsub.f32 %v582, %v590
        %v592 = vmul.f32 %v591, %v591
        %v593 = vsel %vm498, %v592, 0.0
        %594 = vadd.xlane.f32.xlu0 %v593
        %v595 = vpop.xlane.xlu0 %594
        %v596 = vmul.f32 %v595, %v502
        %v597 = vadd.f32 %v596, 1e-05
        %v598 = vrsqrt.pop %v597
        %v599 = vmul.f32 %v591, %v598
        %v600 = vlaneseq
        %v601 = vshrl.u32 %v600, 7
        %v602 = vsub.s32 4, %v601
        %v603 = vrot.slane %v428, %v602
        %v604 = vmul.f32 %v599, %v603
        %v605 = vlaneseq
        %v606 = vshrl.u32 %v605, 7
        %v607 = vsub.s32 5, %v606
        %v608 = vrot.slane %v428, %v607
        %v609 = vadd.f32 %v604, %v608
        %v610 = vmax.f32 %v522, 0.0
        %v611 = vld [vmem:[%s5] sm:$0xf]
        %v612 = vld [vmem:[%s5 + $0x4] sm:$0xf]
        %v613 = vld [vmem:[%s5 + $0x8] sm:$0xf]
        %v614 = vld [vmem:[%s5 + $0xc] sm:$0xf]
        %v615 = vpack.c.bf16 %v610, %v610
        %v616 = vmax.f32 %v609, 0.0
        %v617 = vld [vmem:[#allocation8] sm:$0xf]
        %v618 = vld [vmem:[#allocation8 + $0x4] sm:$0xf]
        %v619 = vld [vmem:[#allocation8 + $0x8] sm:$0xf]
        %v620 = vld [vmem:[#allocation8 + $0xc] sm:$0xf]
        %v621 = vpack.c.bf16 %v616, %v616
        %v626 = vunpack.c.l.b16 %v617
        %v627 = vunpack.c.l.b16 %v618
        %v628 = vunpack.c.l.b16 %v619
        %v629 = vunpack.c.l.b16 %v620
        %v630 = vpack.c.b16 %v627, %v626
        %v631 = vpack.c.b16 %v629, %v628
        %v635 = vsel %vm498, %v621, 0
        %637 = vmatprep.subr.bf16.mxu0 0
        %638 = vmatpush1.bf16.msra.mxu0 0
        %639 = vmatprep.subr.bf16.mxu0 0
        %640 = vmatpush1.bf16.msra.mxu0 0
        %641 = vmatprep.subr.bf16.mxu0 0
        %642 = vmatpush1.bf16.msra.mxu0 0
        %643 = vmatprep.subr.bf16.mxu0 0
        %644 = vmatpush1.bf16.msra.mxu0 0
        %645 = vmatprep.subr.bf16.mxu0 0
        %646 = vmatpush1.bf16.msra.mxu0 0
        %647 = vmatprep.subr.bf16.mxu0 0
        %648 = vmatpush1.bf16.msra.mxu0 0
        %649 = vmatprep.subr.bf16.mxu0 0
        %650 = vmatpush1.bf16.msra.mxu0 %v631
        %651 = vmatprep.subr.bf16.mxu0 0
        %652 = vmatpush1.bf16.msra.mxu0 %v630
        %653 = vmatprep.subr.bf16.mxu0 0
        %654 = vmatpush2.bf16.msra.mxu0 0
        %655 = vmatprep.subr.bf16.mxu0 0
        %656 = vmatpush2.bf16.msra.mxu0 0
        %657 = vmatprep.subr.bf16.mxu0 0
        %658 = vmatpush2.bf16.msra.mxu0 0
        %659 = vmatprep.subr.bf16.mxu0 0
        %660 = vmatpush2.bf16.msra.mxu0 0
        %661 = vmatprep.subr.bf16.mxu0 0
        %662 = vmatpush2.bf16.msra.mxu0 0
        %663 = vmatprep.subr.bf16.mxu0 0
        %664 = vmatpush2.bf16.msra.mxu0 0
        %665 = vmatprep.subr.bf16.mxu0 0
        %666 = vmatpush2.bf16.msra.mxu0 0
        %667 = vmatprep.subr.bf16.mxu0 0
        %668 = vmatpush2.bf16.msra.mxu0 0
        %669 = vmatprep.mubr.bf16.mxu0 0
        %670 = vmatmul.mubr.bf16.gmra.mxu0 %v635
        %v671 = vpop.f32.mrf.mxu0
        %v672 = vadd.f32 0.0, %v671
        %v673 = vpop.f32.mrf.mxu0
        %v674 = vpop.f32.mrf.mxu0
        %v675 = vpop.f32.mrf.mxu0
        %676 = vdwg.mxu0
        %v681 = vunpack.c.l.b16 %v611
        %v682 = vunpack.c.l.b16 %v612
        %v683 = vunpack.c.l.b16 %v613
        %v684 = vunpack.c.l.b16 %v614
        %v685 = vpack.c.b16 %v682, %v681
        %v686 = vpack.c.b16 %v684, %v683
        %v690 = vsel %vm498, %v615, 0
        %692 = vmatprep.subr.bf16.mxu0 0
        %693 = vmatpush1.bf16.msra.mxu0 0
        %694 = vmatprep.subr.bf16.mxu0 0
        %695 = vmatpush1.bf16.msra.mxu0 0
        %696 = vmatprep.subr.bf16.mxu0 0
        %697 = vmatpush1.bf16.msra.mxu0 0
        %698 = vmatprep.subr.bf16.mxu0 0
        %699 = vmatpush1.bf16.msra.mxu0 0
        %700 = vmatprep.subr.bf16.mxu0 0
        %701 = vmatpush1.bf16.msra.mxu0 0
        %702 = vmatprep.subr.bf16.mxu0 0
        %703 = vmatpush1.bf16.msra.mxu0 0
        %704 = vmatprep.subr.bf16.mxu0 0
        %705 = vmatpush1.bf16.msra.mxu0 %v686
        %706 = vmatprep.subr.bf16.mxu0 0
        %707 = vmatpush1.bf16.msra.mxu0 %v685
        %708 = vmatprep.subr.bf16.mxu0 0
        %709 = vmatpush2.bf16.msra.mxu0 0
        %710 = vmatprep.subr.bf16.mxu0 0
        %711 = vmatpush2.bf16.msra.mxu0 0
        %712 = vmatprep.subr.bf16.mxu0 0
        %713 = vmatpush2.bf16.msra.mxu0 0
        %714 = vmatprep.subr.bf16.mxu0 0
        %715 = vmatpush2.bf16.msra.mxu0 0
        %716 = vmatprep.subr.bf16.mxu0 0
        %717 = vmatpush2.bf16.msra.mxu0 0
        %718 = vmatprep.subr.bf16.mxu0 0
        %719 = vmatpush2.bf16.msra.mxu0 0
        %720 = vmatprep.subr.bf16.mxu0 0
        %721 = vmatpush2.bf16.msra.mxu0 0
        %722 = vmatprep.subr.bf16.mxu0 0
        %723 = vmatpush2.bf16.msra.mxu0 0
        %724 = vmatprep.mubr.bf16.mxu0 0
        %725 = vmatmul.mubr.bf16.gmra.mxu0 %v690
        %v726 = vpop.f32.mrf.mxu0
        %v727 = vadd.f32 %v672, %v726
        %v728 = vpop.f32.mrf.mxu0
        %v729 = vpop.f32.mrf.mxu0
        %v730 = vpop.f32.mrf.mxu0
        %731 = vdwg.mxu0
        %v732 = vlaneseq
        %v733 = vshrl.u32 %v732, 7
        %v734 = vsub.s32 6, %v733
        %v735 = vrot.slane %v428, %v734
        %v736 = vadd.f32 %v727, %v735
        %v737 = vsel %vm498, %v736, 0.0
        %738 = vadd.xlane.f32.xlu0 %v737
        %v739 = vpop.xlane.xlu0 %738
        %v740 = vmul.f32 %v739, %v502
        %v741 = vsub.f32 %v736, %v740
        %v742 = vmul.f32 %v741, %v741
        %v743 = vsel %vm498, %v742, 0.0
        %744 = vadd.xlane.f32.xlu0 %v743
        %v745 = vpop.xlane.xlu0 %744
        %v746 = vmul.f32 %v745, %v502
        %v747 = vadd.f32 %v746, 1e-05
        %v748 = vrsqrt.pop %v747
        %v749 = vmul.f32 %v741, %v748
        %v750 = vlaneseq
        %v751 = vshrl.u32 %v750, 7
        %v752 = vsub.s32 7, %v751
        %v753 = vrot.slane %v428, %v752
        %v754 = vmul.f32 %v749, %v753
        %v755 = vlaneseq
        %v756 = vshrl.u32 %v755, 7
        %v757 = vsub.s32 0, %v756
        %v758 = vrot.slane %v429, %v757
        %v759 = vadd.f32 %v754, %v758
        %v760 = vld [vmem:[#allocation10] sm:$0xff]
        %v761 = vadd.f32 %v759, %v760
        %v762 = vlaneseq
        %v763 = vshrl.u32 %v762, 7
        %v764 = vsub.s32 1, %v763
        %v765 = vrot.slane %v429, %v764
        %v766 = vadd.f32 %v761, %v765
        %v767 = vsel %vm498, %v766, 0.0
        %768 = vadd.xlane.f32.xlu0 %v767
        %v769 = vpop.xlane.xlu0 %768
        %v770 = vmul.f32 %v769, %v502
        %v771 = vsub.f32 %v766, %v770
        %v772 = vmul.f32 %v771, %v771
        %v773 = vsel %vm498, %v772, 0.0
        %774 = vadd.xlane.f32.xlu0 %v773
        %v775 = vpop.xlane.xlu0 %774
        %v776 = vmul.f32 %v775, %v502
        %v777 = vadd.f32 %v776, 1e-12
        %v778 = vrsqrt.pop %v777
        %v779 = vmul.f32 %v771, %v778
        %v780 = vlaneseq
        %v781 = vshrl.u32 %v780, 7
        %v782 = vsub.s32 2, %v781
        %v783 = vrot.slane %v429, %v782
        %v784 = vmul.f32 %v779, %v783
        %v785 = vlaneseq
        %v786 = vshrl.u32 %v785, 7
        %v787 = vsub.s32 3, %v786
        %v788 = vrot.slane %v429, %v787
        %v789 = vadd.f32 %v784, %v788
        %790 = vst.msk [vmem:[%s418] sm:$0xff] %vm498, %v789
        %s791 = sand.u32 %s234, 1
        %s792 = scalar_lea.sflag [#allocation4], %s791
        %s793 = sand.u32 %s234, 1
        %s794 = smul.addr %s793, 8
        %s795 = scalar_lea.vmem [#allocation13], %s794
        // Predicated region
        $region81: #{tpu_custom_call.1} parent=55 // pred_check
          %p796 = pneg %p244
        $region82: #{tpu_custom_call.1} parent=55 // pred_check_branch
          %798 = sbr.rel (%p796) target = $region84
        $region83: #{tpu_custom_call.1} parent=55 // pred_region
          %s800 = ssub.s32 128, 128
          %801 = vsyncadd %s792, %s800
          %s802 = smul.addr %s27, 128
          %s803 = scalar_lea.hbm %s9, %s802
          %s805 = sshll.u32 %s795, 4
          %s806 = int_to_ptr.vmem [resolvable:$true] %s805
          %808 = dma.vmem_to_hbm [thread:$0]  %s806, 128, %s803, %s792
        $region84: #{tpu_custom_call.1} parent=55 // pred_fallthru
          _
      $region56: #{tpu_custom_call.1} parent=5 // pred_fallthru
        _
      %p809 = scmp.le.s32.totalorder 2, %s22
      // Predicated region
      $region85: #{tpu_custom_call.1} parent=5 // pred_check
        %p810 = pneg %p809
      $region86: #{tpu_custom_call.1} parent=5 // pred_check_branch
        %812 = sbr.rel (%p810) target = $region88
      $region87: #{tpu_custom_call.1} parent=5 // pred_region
        %s813 = ssub.s32 %s22, 2
        // Predicated region
        $region89: #{tpu_custom_call.1} parent=87 // pred_check
          %p814 = pneg %p250
        $region90: #{tpu_custom_call.1} parent=87 // pred_check_branch
          %816 = sbr.rel (%p814) target = $region92
        $region91: #{tpu_custom_call.1} parent=87 // pred_region
          %s817 = sand.u32 %s235, 1
          %s818 = scalar_lea.sflag [#allocation4], %s817
          %s819 = sand.u32 %s235, 1
          %s820 = smul.addr %s819, 8
          %s821 = scalar_lea.vmem [#allocation13], %s820
          %822 = dma.done %s818, 128
        $region92: #{tpu_custom_call.1} parent=87 // pred_fallthru
          _
      $region88: #{tpu_custom_call.1} parent=5 // pred_fallthru
        _
    $region6: #{tpu_custom_call.1} parent=1 // loop_footer
      %s26 = sadd.s32 1, %s22
    $region7: #{tpu_custom_call.1} parent=1 // loop_footer_branch
      %21 = sbr.rel target = $region3
    $region8: #{tpu_custom_call.1} parent=1 // loop_exit
      _
    %823 = vsyncpa [#allocation3], 1
    %s824 = scalar_lea.sflag [#allocation3], 1
    %825 = vsyncpa %s824, 1
    %826 = vsyncpa [#allocation6], 1
    %827 = vsyncpa [#allocation9], 1
    %828 = vsyncpa [#allocation12], 1
    %829 = vsyncpa [#allocation4], 1
    %s830 = scalar_lea.sflag [#allocation4], 1
    %831 = vsyncpa %s830, 1

</llo_original>
